<compile_context>
chip_gen: v6e
topology: v6e:2x2x1
jax: 0.10.0
libtpu: 0.0.40
codegen_flags: <defaults>
</compile_context>

<pallas_src>
import functools

import jax
import jax.numpy as jnp
from jax import lax
from jax.experimental import pallas as pl
from jax.experimental.pallas import tpu as pltpu

_LANES = 128


def _round_up(a, b):
    return -(-a // b) * b


def _fold8(v):
    """Sum an (r, 128) f32 tile down to (8, 128) over 8-row groups (r % 8 == 0)."""
    r = v.shape[0]
    if r == 8:
        return v
    acc = v[0:8, :]
    for k in range(1, r // 8):
        acc = acc + v[k * 8:(k + 1) * 8, :]
    return acc


def _elem_terms(x, t, alpha, gamma):
    """Per-element BCE log-term and focal weight; one exp + one log1p on the EUP."""
    e = jnp.exp(-jnp.abs(x))                      # exp(-|x|)
    log1pe = jnp.log1p(e)                         # log(1 + exp(-|x|)), stable tail
    # t*log(sigmoid(x)) + (1-t)*log(1-sigmoid(x))  ==  t*x - max(x,0) - log1pe
    bce = t * x - jnp.maximum(x, 0.0) - log1pe
    d = 1.0 / (1.0 + e)
    p = jnp.where(x >= 0.0, d, e * d)             # sigmoid(x), no second exp
    one_m = t + p - 2.0 * (t * p)                 # == 1 - p_t (exact for any t)
    g = float(gamma)
    if g == 2.0:                                  # static fast path (default)
        mod = one_m * one_m
    elif g == 1.0:
        mod = one_m
    elif g == 0.0:
        mod = jnp.ones_like(one_m)
    else:
        mod = jnp.power(one_m, jnp.float32(g))
    alpha_t = (1.0 - alpha) + (2.0 * alpha - 1.0) * t
    return bce, alpha_t * mod


def _focal_loss_kernel(x_ref, t_ref, out_ref, *, alpha, gamma, block_rows,
                       strip, num_strips, num_blocks, valid_rows, last_ragged):
    base_row = pl.program_id(0) * block_rows      # scalar, int32

    def strip_sums(r0, apply_mask):
        x = x_ref[pl.ds(r0, strip), :].astype(jnp.float32)
        t = t_ref[pl.ds(r0, strip), :].astype(jnp.float32)
        bce, fl = _elem_terms(x, t, alpha, gamma)
        if apply_mask:
            # Row-level mask only (lane padding already contributes exactly 0);
            # row indices stay far below 2**31 so no flat-index overflow.
            row = base_row + r0 + lax.broadcasted_iota(
                jnp.int32, (strip, _LANES), 0)
            keep = row < valid_rows
            zero = jnp.zeros_like(bce)
            bce = jnp.where(keep, bce, zero)
            fl = jnp.where(keep, fl, zero)
        return _fold8(bce), _fold8(fl)

    def block_sums(apply_mask):
        if num_strips == 1:
            return strip_sums(0, apply_mask)

        def body(s, carry):
            acc_bce, acc_fl = carry
            b8, f8 = strip_sums(pl.multiple_of(s * strip, strip), apply_mask)
            return acc_bce + b8, acc_fl + f8

        zero = jnp.zeros((8, _LANES), jnp.float32)
        return lax.fori_loop(0, num_strips, body, (zero, zero))

    if last_ragged:
        if num_blocks == 1:
            bce8, fl8 = block_sums(True)
        else:
            # Only the last grid step pays the masking cost.
            bce8, fl8 = lax.cond(pl.program_id(0) == num_blocks - 1,
                                 lambda: block_sums(True),
                                 lambda: block_sums(False))
    else:
        bce8, fl8 = block_sums(False)

    out_ref[0:8, :] = bce8
    out_ref[8:16, :] = fl8


def focal_loss(inputss, targets, alpha=0.25, gamma=2.0, block_rows=None):
    """Pallas implementation of FocalLoss.forward. Returns a float32 scalar."""
    x = jnp.asarray(inputss)
    t = jnp.asarray(targets)
    allowed = (jnp.dtype(jnp.float32), jnp.dtype(jnp.bfloat16))
    if x.dtype not in allowed:
        x = x.astype(jnp.float32)
    if t.dtype not in allowed:
        t = t.astype(jnp.float32)
    x, t = jnp.broadcast_arrays(x, t)
    x = x.reshape(-1)
    t = t.reshape(-1)
    n = x.shape[0]

    rows = -(-n // _LANES)
    pad = rows * _LANES - n
    if pad:
        # Only ragged-on-lanes N needs a pad copy (N % 128 == 0 -> zero copies).
        # Padding x with a large negative logit and t with 0 makes every padded
        # element contribute *exactly* 0 to both sums -> no lane masking needed.
        rows = _round_up(rows, 8)
        pad = rows * _LANES - n
        x = jnp.pad(x, (0, pad), constant_values=-1e4)
        t = jnp.pad(t, (0, pad), constant_values=0)
    x2 = x.reshape(rows, _LANES)
    t2 = t.reshape(rows, _LANES)

    if block_rows is None:
        if rows <= 64:
            block_rows = _round_up(rows, 8)
        elif rows <= 2048:
            # At least 2 grid steps so both v7x TensorCores get work.
            block_rows = _round_up(-(-rows // 2), 64)
        else:
            block_rows = 1024
    else:
        block_rows = max(8, _round_up(int(block_rows), 8))
        if block_rows > 64:
            block_rows = _round_up(block_rows, 64)

    strip = block_rows if block_rows <= 64 else 64
    num_strips = block_rows // strip
    num_blocks = -(-rows // block_rows)
    last_ragged = (rows % block_rows) != 0

    kernel = functools.partial(
        _focal_loss_kernel, alpha=float(alpha), gamma=float(gamma),
        block_rows=block_rows, strip=strip, num_strips=num_strips,
        num_blocks=num_blocks, valid_rows=rows, last_ragged=last_ragged)

    parts = pl.pallas_call(
        kernel,
        grid=(num_blocks,),
        in_specs=[pl.BlockSpec((block_rows, _LANES), lambda i: (i, 0)),
                  pl.BlockSpec((block_rows, _LANES), lambda i: (i, 0))],
        out_specs=pl.BlockSpec((16, _LANES), lambda i: (i, 0)),
        out_shape=jax.ShapeDtypeStruct((num_blocks * 16, _LANES), jnp.float32),
        compiler_params=pltpu.CompilerParams(
            dimension_semantics=("parallel",)),
        cost_estimate=pl.CostEstimate(
            flops=20 * rows * _LANES,
            transcendentals=2 * rows * _LANES,
            bytes_accessed=rows * _LANES * (x2.dtype.itemsize + t2.dtype.itemsize)
                           + num_blocks * 16 * _LANES * 4),
    )(x2, t2)

    # Tiny final reduction in the wrapper: rows 0-7 of each block are the BCE
    # partials, rows 8-15 the focal-weight partials.
    sums = jnp.sum(parts.reshape(num_blocks, 2, 8, _LANES), axis=(0, 2, 3))
    inv_n = 1.0 / float(n)
    bce_loss = -sums[0] * inv_n                 # scalar BCE factor
    focal_mean = sums[1] * inv_n                # mean(alpha_t * (1-p_t)^gamma)
    return bce_loss * focal_mean


class FocalLoss:
    """Thin functional stand-in for the PyTorch module (no parameters)."""

    def __init__(self, alpha=0.25, gamma=2.0):
        self.alpha = alpha
        self.gamma = gamma

    def __call__(self, inputss, targets):
        return focal_loss(inputss, targets, self.alpha, self.gamma)


def _reference(logits, targets, alpha=0.25, gamma=2.0):
    # Pure-JAX mirror of the PyTorch forward (BCE term is a scalar).
    p = jax.nn.sigmoid(logits)
    bce = -jnp.mean(targets * jnp.log(p) + (1.0 - targets) * jnp.log(1.0 - p))
    p_t = p * targets + (1.0 - p) * (1.0 - targets)
    loss = bce * (1.0 - p_t) ** gamma
    alpha_t = alpha * targets + (1.0 - alpha) * (1.0 - targets)
    return jnp.mean(alpha_t * loss)


if __name__ == "__main__":
    key = jax.random.PRNGKey(0)
    k1, k2, k3, k4, k5, k6 = jax.random.split(key, 6)

    # Main check: shapes implied by a typical focal-loss use (logits + binary targets).
    shape = (2, 4, 16, 16)
    logits = jax.random.normal(k1, shape, jnp.float32)
    targets = (jax.random.uniform(k2, shape) > 0.5).astype(jnp.float32)

    fl = FocalLoss(alpha=0.25, gamma=2.0)
    loss = jax.block_until_ready(fl(logits, targets))
    ref = _reference(logits, targets, 0.25, 2.0)
    assert jnp.allclose(loss, ref, rtol=1e-5, atol=1e-6), (loss, ref)

    # Second check: ragged N (not a multiple of 128) -> constant-pad path.
    shape2 = (3, 5, 7)
    logits2 = jax.random.normal(k3, shape2, jnp.float32)
    targets2 = (jax.random.uniform(k4, shape2) > 0.5).astype(jnp.float32)
    loss2 = jax.block_until_ready(focal_loss(logits2, targets2))
    ref2 = _reference(logits2, targets2, 0.25, 2.0)
    assert jnp.allclose(loss2, ref2, rtol=1e-5, atol=1e-6), (loss2, ref2)

    # Third check: multi-block grid with a row-ragged last block (exercises the
    # lax.cond-gated mask path and the strip fori_loop).
    shape3 = (4, 42, 128)            # 21504 elems -> 168 rows, 2 blocks of 128
    logits3 = jax.random.normal(k5, shape3, jnp.float32)
    targets3 = (jax.random.uniform(k6, shape3) > 0.5).astype(jnp.float32)
    loss3 = jax.block_until_ready(focal_loss(logits3, targets3))
    ref3 = _reference(logits3, targets3, 0.25, 2.0)
    assert jnp.allclose(loss3, ref3, rtol=1e-5, atol=1e-6), (loss3, ref3)

    print("KERNEL_OK")
</pallas_src>

<mosaic_0001>
module attributes {stable_mosaic.version = 11 : i64} {
  func.func @_focal_loss_kernel(%arg0: i32, %arg1: memref<16x128xf32, #tpu.memory_space<vmem>>, %arg2: memref<16x128xf32, #tpu.memory_space<vmem>>, %arg3: memref<16x128xf32, #tpu.memory_space<vmem>>) attributes {dimension_semantics = [#tpu.dimension_semantics<parallel>], iteration_bounds = array<i64: 1>, scalar_prefetch = 0 : i64, scratch_operands = 0 : i64, tpu.core_type = #tpu.core_type<tc>, window_params = [{transform_indices = @transform_0, window_bounds = array<i64: 16, 128>}, {transform_indices = @transform_1, window_bounds = array<i64: 16, 128>}, {transform_indices = @transform_2, window_bounds = array<i64: 16, 128>}]} {
    %c0 = arith.constant 0 : index
    %c0_0 = arith.constant 0 : index
    %0 = vector.load %arg1[%c0, %c0_0] : memref<16x128xf32, #tpu.memory_space<vmem>>, vector<16x128xf32>
    %c0_1 = arith.constant 0 : index
    %c0_2 = arith.constant 0 : index
    %1 = vector.load %arg2[%c0_1, %c0_2] : memref<16x128xf32, #tpu.memory_space<vmem>>, vector<16x128xf32>
    %2 = math.absf %0 : vector<16x128xf32>
    %cst = arith.constant 0.000000e+00 : f32
    %3 = vector.broadcast %cst : f32 to vector<16x128xf32>
    %4 = arith.subf %3, %2 : vector<16x128xf32>
    %5 = math.exp %4 : vector<16x128xf32>
    %6 = math.log1p %5 : vector<16x128xf32>
    %7 = arith.mulf %1, %0 : vector<16x128xf32>
    %cst_3 = arith.constant 0.000000e+00 : f32
    %8 = vector.broadcast %cst_3 : f32 to vector<16x128xf32>
    %9 = arith.maximumf %0, %8 : vector<16x128xf32>
    %10 = arith.subf %7, %9 : vector<16x128xf32>
    %11 = arith.subf %10, %6 : vector<16x128xf32>
    %cst_4 = arith.constant 1.000000e+00 : f32
    %12 = vector.broadcast %cst_4 : f32 to vector<16x128xf32>
    %13 = arith.addf %12, %5 : vector<16x128xf32>
    %cst_5 = arith.constant 1.000000e+00 : f32
    %14 = vector.broadcast %cst_5 : f32 to vector<16x128xf32>
    %15 = arith.divf %14, %13 : vector<16x128xf32>
    %cst_6 = arith.constant 0.000000e+00 : f32
    %16 = vector.broadcast %cst_6 : f32 to vector<16x128xf32>
    %17 = arith.cmpf oge, %0, %16 : vector<16x128xf32>
    %18 = arith.mulf %5, %15 : vector<16x128xf32>
    %19 = arith.select %17, %15, %18 : vector<16x128xi1>, vector<16x128xf32>
    %20 = arith.addf %1, %19 : vector<16x128xf32>
    %21 = arith.mulf %1, %19 : vector<16x128xf32>
    %cst_7 = arith.constant 2.000000e+00 : f32
    %22 = vector.broadcast %cst_7 : f32 to vector<16x128xf32>
    %23 = arith.mulf %22, %21 : vector<16x128xf32>
    %24 = arith.subf %20, %23 : vector<16x128xf32>
    %25 = arith.mulf %24, %24 : vector<16x128xf32>
    %cst_8 = arith.constant -5.000000e-01 : f32
    %26 = vector.broadcast %cst_8 : f32 to vector<16x128xf32>
    %27 = arith.mulf %26, %1 : vector<16x128xf32>
    %cst_9 = arith.constant 7.500000e-01 : f32
    %28 = vector.broadcast %cst_9 : f32 to vector<16x128xf32>
    %29 = arith.addf %28, %27 : vector<16x128xf32>
    %30 = arith.mulf %29, %25 : vector<16x128xf32>
    %31 = vector.extract_strided_slice %11 {offsets = [0, 0], sizes = [8, 128], strides = [1, 1]} : vector<16x128xf32> to vector<8x128xf32>
    %32 = vector.extract_strided_slice %11 {offsets = [8, 0], sizes = [8, 128], strides = [1, 1]} : vector<16x128xf32> to vector<8x128xf32>
    %33 = arith.addf %31, %32 : vector<8x128xf32>
    %34 = vector.extract_strided_slice %30 {offsets = [0, 0], sizes = [8, 128], strides = [1, 1]} : vector<16x128xf32> to vector<8x128xf32>
    %35 = vector.extract_strided_slice %30 {offsets = [8, 0], sizes = [8, 128], strides = [1, 1]} : vector<16x128xf32> to vector<8x128xf32>
    %36 = arith.addf %34, %35 : vector<8x128xf32>
    %c0_10 = arith.constant 0 : index
    %c0_11 = arith.constant 0 : index
    %37 = vector.load %arg3[%c0_10, %c0_11] : memref<16x128xf32, #tpu.memory_space<vmem>>, vector<8x128xf32>
    tpu.vector_store %arg3[%c0_10, %c0_11], %33 {strides = array<i32>} : memref<16x128xf32, #tpu.memory_space<vmem>>, vector<8x128xf32>,
    %c8 = arith.constant 8 : index
    %c0_12 = arith.constant 0 : index
    %38 = vector.load %arg3[%c8, %c0_12] : memref<16x128xf32, #tpu.memory_space<vmem>>, vector<8x128xf32>
    tpu.vector_store %arg3[%c8, %c0_12], %36 {strides = array<i32>} : memref<16x128xf32, #tpu.memory_space<vmem>>, vector<8x128xf32>,
    return
  }
  func.func @transform_0(%arg0: i32) -> (i32, i32) {
    %c0_i32 = arith.constant 0 : i32
    %c0_i32_0 = arith.constant 0 : i32
    return %arg0, %c0_i32 : i32, i32
  }
  func.func @transform_1(%arg0: i32) -> (i32, i32) {
    %c0_i32 = arith.constant 0 : i32
    %c0_i32_0 = arith.constant 0 : i32
    return %arg0, %c0_i32 : i32, i32
  }
  func.func @transform_2(%arg0: i32) -> (i32, i32) {
    %c0_i32 = arith.constant 0 : i32
    %c0_i32_0 = arith.constant 0 : i32
    return %arg0, %c0_i32 : i32, i32
  }
}

</mosaic_0001>

<llo_original>
// kernel: tpu_custom_call.1
$region0: #{tpu_custom_call.1}
  #allocation0 [shape = 'u32[]', space=smem, size = 0x4, offset = 0x4, fixed_abs, tag = 'smem constant byte address 0x4 - core index']
  #allocation1 [shape = 'u32[144,128]{1,0:T(1,128)}', space=vmem, size = 0x12000, scoped, tag = 'internal scratch']
  %s0 = inlined_call_operand.hbm [shape: f32[16,128], index: 0, kind: input, shape index: {}]
  %s1 = inlined_call_operand.hbm [shape: f32[16,128], index: 1, kind: input, shape index: {}]
  %s2 = inlined_call_operand.hbm [shape: f32[16,128], index: 2, kind: output, shape index: {}]
  %s3 = sld [smem:[#allocation0]]
  $region26: #{tpu_custom_call.1} parent=0
    _
  %s5 = ssub.s32 1, %s3
  %s6 = scalar_select 0, %s5, %s3
  $region1: #{tpu_custom_call.1} parent=0
    #allocation2 [shape = 'u8[8192]{0}', space=vmem, size = 0x2000, scoped, tag = 'input window, operand 0, single buffered']
    #allocation3 [shape = 's32[1]{0}', space=sflag, size = 0x4, scoped, tag = 'scoped memory for tpu_custom_call.1']
    #allocation4 [shape = 's32[1]{0}', space=sflag, size = 0x4, scoped, tag = 'scoped memory for tpu_custom_call.1']
    #allocation5 [shape = 'u8[8192]{0}', space=vmem, size = 0x2000, scoped, tag = 'input window, operand 1, single buffered']
    #allocation6 [shape = 's32[1]{0}', space=sflag, size = 0x4, scoped, tag = 'scoped memory for tpu_custom_call.1']
    #allocation7 [shape = 'u8[8192]{0}', space=vmem, size = 0x2000, scoped, tag = 'output window, operand 0, single buffered']
    %7 = vsyncpa [#allocation3], 0
    %8 = vsyncpa [#allocation6], 0
    %9 = vsyncpa [#allocation4], 0
    // Predicated region
    $region2: #{tpu_custom_call.1} parent=1 // pred_check
      _
    $region3: #{tpu_custom_call.1} parent=1 // pred_check_branch
      %11 = sbr.rel (0) target = $region5
    $region4: #{tpu_custom_call.1} parent=1 // pred_region
      %s13 = ssub.s32 256, 256
      %14 = vsyncadd [#allocation3], %s13
      %s15 = sshll.u32 [#allocation2], 4
      %s16 = int_to_ptr.vmem [resolvable:$true] %s15
      %21 = dma.hbm_to_vmem [thread:$0]  %s0, 256, %s16, [#allocation3], 128, 128, 8
    $region5: #{tpu_custom_call.1} parent=1 // pred_fallthru
      _
    // Predicated region
    $region6: #{tpu_custom_call.1} parent=1 // pred_check
      _
    $region7: #{tpu_custom_call.1} parent=1 // pred_check_branch
      %23 = sbr.rel (0) target = $region9
    $region8: #{tpu_custom_call.1} parent=1 // pred_region
      %s25 = ssub.s32 256, 256
      %26 = vsyncadd [#allocation6], %s25
      %s27 = sshll.u32 [#allocation5], 4
      %s28 = int_to_ptr.vmem [resolvable:$true] %s27
      %33 = dma.hbm_to_vmem [thread:$0]  %s1, 256, %s28, [#allocation6], 128, 128, 8
    $region9: #{tpu_custom_call.1} parent=1 // pred_fallthru
      _
    // Predicated region
    $region10: #{tpu_custom_call.1} parent=1 // pred_check
      _
    $region11: #{tpu_custom_call.1} parent=1 // pred_check_branch
      %35 = sbr.rel (0) target = $region13
    $region12: #{tpu_custom_call.1} parent=1 // pred_region
      %36 = dma.done [#allocation3], 256
    $region13: #{tpu_custom_call.1} parent=1 // pred_fallthru
      _
    // Predicated region
    $region14: #{tpu_custom_call.1} parent=1 // pred_check
      _
    $region15: #{tpu_custom_call.1} parent=1 // pred_check_branch
      %38 = sbr.rel (0) target = $region17
    $region16: #{tpu_custom_call.1} parent=1 // pred_region
      %39 = dma.done [#allocation6], 256
    $region17: #{tpu_custom_call.1} parent=1 // pred_fallthru
      _
    %v40 = vld [vmem:[#allocation2] sm:$0xff]
    %v41 = vld [vmem:[#allocation2 + $0x8] sm:$0xff]
    %v42 = vld [vmem:[#allocation5] sm:$0xff]
    %v43 = vld [vmem:[#allocation5 + $0x8] sm:$0xff]
    %v44 = vand.u32 2147483647, %v40
    %v45 = vand.u32 2147483647, %v41
    %v46 = vsub.f32 0.0, %v44
    %v47 = vsub.f32 0.0, %v45
    %v48 = vmul.f32 %v46, 1.442695
    %v49 = vpow.pop %v48
    %v50 = vmul.f32 %v47, 1.442695
    %v51 = vpow.pop %v50
    %v52 = vadd.f32 %v49, 1.0
    %v53 = vlog2.pop %v52
    %v54 = vmul.f32 %v53, 0.6931472
    %v55 = vmul.f32 -0.5, %v49
    %v56 = vadd.f32 %v55, 1.0
    %v57 = vmul.f32 %v56, %v49
    %v58 = vand.u32 2147483647, %v49
    %vm59 = vcmp.lt.f32.partialorder %v58, 0.0004427343
    %v60 = vsel %vm59, %v57, %v54
    %v61 = vadd.f32 %v51, 1.0
    %v62 = vlog2.pop %v61
    %v63 = vmul.f32 %v62, 0.6931472
    %v64 = vmul.f32 -0.5, %v51
    %v65 = vadd.f32 %v64, 1.0
    %v66 = vmul.f32 %v65, %v51
    %v67 = vand.u32 2147483647, %v51
    %vm68 = vcmp.lt.f32.partialorder %v67, 0.0004427343
    %v69 = vsel %vm68, %v66, %v63
    %v70 = vmul.f32 %v42, %v40
    %v71 = vmul.f32 %v43, %v41
    %v72 = vmax.f32 %v40, 0.0
    %v73 = vmax.f32 %v41, 0.0
    %v74 = vsub.f32 %v70, %v72
    %v75 = vsub.f32 %v71, %v73
    %v76 = vsub.f32 %v74, %v60
    %v77 = vsub.f32 %v75, %v69
    %v78 = vadd.f32 %v49, 1.0
    %v79 = vadd.f32 %v51, 1.0
    %v80 = vrcp.pop %v78
    %v81 = vmul.f32 1.0, %v80
    %v82 = vrcp.pop %v79
    %v83 = vmul.f32 1.0, %v82
    %vm84 = vcmp.ge.f32.partialorder %v40, 0.0
    %vm85 = vcmp.ge.f32.partialorder %v41, 0.0
    %v86 = vmul.f32 %v49, %v81
    %v87 = vmul.f32 %v51, %v83
    %v88 = vsel %vm84, %v81, %v86
    %v89 = vsel %vm85, %v83, %v87
    %v90 = vadd.f32 %v42, %v88
    %v91 = vadd.f32 %v43, %v89
    %v92 = vmul.f32 %v42, %v88
    %v93 = vmul.f32 %v43, %v89
    %v94 = vmul.f32 %v92, 2.0
    %v95 = vmul.f32 %v93, 2.0
    %v96 = vsub.f32 %v90, %v94
    %v97 = vsub.f32 %v91, %v95
    %v98 = vmul.f32 %v96, %v96
    %v99 = vmul.f32 %v97, %v97
    %v100 = vmul.f32 %v42, -0.5
    %v101 = vmul.f32 %v43, -0.5
    %v102 = vadd.f32 %v100, 0.75
    %v103 = vadd.f32 %v101, 0.75
    %v104 = vmul.f32 %v102, %v98
    %v105 = vmul.f32 %v103, %v99
    %v106 = vadd.f32 %v76, %v77
    %v107 = vadd.f32 %v104, %v105
    %108 = vst [vmem:[#allocation7] sm:$0xff] %v106
    %109 = vst [vmem:[#allocation7 + $0x8] sm:$0xff] %v107
    // Predicated region
    $region18: #{tpu_custom_call.1} parent=1 // pred_check
      _
    $region19: #{tpu_custom_call.1} parent=1 // pred_check_branch
      %111 = sbr.rel (0) target = $region21
    $region20: #{tpu_custom_call.1} parent=1 // pred_region
      %s113 = ssub.s32 256, 256
      %114 = vsyncadd [#allocation4], %s113
      %s115 = sshll.u32 [#allocation7], 4
      %s116 = int_to_ptr.vmem [resolvable:$true] %s115
      %121 = dma.vmem_to_hbm [thread:$0]  %s116, 256, %s2, [#allocation4], 128, 128, 8
    $region21: #{tpu_custom_call.1} parent=1 // pred_fallthru
      _
    // Predicated region
    $region22: #{tpu_custom_call.1} parent=1 // pred_check
      _
    $region23: #{tpu_custom_call.1} parent=1 // pred_check_branch
      %123 = sbr.rel (0) target = $region25
    $region24: #{tpu_custom_call.1} parent=1 // pred_region
      %124 = dma.done [#allocation4], 256
    $region25: #{tpu_custom_call.1} parent=1 // pred_fallthru
      _
    %125 = vsyncpa [#allocation3], 1
    %126 = vsyncpa [#allocation6], 1
    %127 = vsyncpa [#allocation4], 1

</llo_original>
